<compile_context>
chip_gen: v6e
topology: v6e:2x2x1
jax: 0.10.0
libtpu: 0.0.40
codegen_flags: <defaults>
</compile_context>

<pallas_src>
import jax
import jax.numpy as jnp
from jax import lax
from jax.experimental import pallas as pl
from jax.experimental.pallas import tpu as pltpu


def _mlp_chain_kernel(x_ref, w_ref, o_ref, cur_ref, nxt_ref):
    """Grid step (layer, nt): y[:, nt*TN:(nt+1)*TN] = act_layer @ Wt_layer[:, tile]."""
    layer = pl.program_id(0)
    nt = pl.program_id(1)
    n_layers = pl.num_programs(0)
    tn = w_ref.shape[-1]

    # Start of layer 0: load the kernel input into the bf16 "current" buffer.
    @pl.when(jnp.logical_and(nt == 0, layer == 0))
    def _init_from_x():
        cur_ref[...] = x_ref[...].astype(jnp.bfloat16)

    # Start of every later layer: previous layer's output becomes current input.
    @pl.when(jnp.logical_and(nt == 0, layer > 0))
    def _roll():
        cur_ref[...] = nxt_ref[...]

    # (B, H) @ (H, TN) -> (B, TN), bf16 operands, fp32 accumulation on the MXU.
    y = lax.dot_general(
        cur_ref[...],
        w_ref[...],
        dimension_numbers=(((1,), (0,)), ((), ())),
        preferred_element_type=jnp.float32,
    )

    col = pl.multiple_of(nt * tn, tn)
    is_last = layer == n_layers - 1

    @pl.when(jnp.logical_not(is_last))
    def _store_next():
        nxt_ref[:, pl.ds(col, tn)] = y.astype(jnp.bfloat16)

    @pl.when(is_last)
    def _store_out():
        o_ref[:, pl.ds(col, tn)] = y.astype(o_ref.dtype)


def mlp_model_forward(x, weights, *, tn=None):
    """x: [B, H] float32; weights: [L, H, H] float32 in PyTorch Linear layout (out, in)."""
    B, H = x.shape
    L = weights.shape[0]
    assert weights.shape == (L, H, H)

    if tn is None:
        tn = next((t for t in (1024, 512, 256, 128) if H % t == 0), H)
    assert H % tn == 0, (H, tn)
    assert tn % 128 == 0 or tn == H, tn
    n_tiles = H // tn

    # One-time XLA transform outside the kernel: (out, in) -> (in, out), bf16.
    w_t = jnp.transpose(weights, (0, 2, 1)).astype(jnp.bfloat16)

    # VMEM budget estimate (double-buffered weight tile + resident blocks/scratch).
    itemsize = x.dtype.itemsize
    vmem_bytes = (
        2 * H * tn * 2            # bf16 weight tile, double-buffered
        + 2 * B * H * itemsize    # x input block
        + 2 * B * H * itemsize    # output block
        + 2 * B * H * 2           # cur/nxt bf16 activation scratch
    )
    vmem_limit = min(max(2 * vmem_bytes, 32 * 1024 * 1024), 100 * 1024 * 1024)

    return pl.pallas_call(
        _mlp_chain_kernel,
        out_shape=jax.ShapeDtypeStruct((B, H), x.dtype),
        grid_spec=pltpu.PrefetchScalarGridSpec(
            num_scalar_prefetch=0,
            grid=(L, n_tiles),
            in_specs=[
                # Activation input: constant block index -> DMA'd once, read at step 0.
                pl.BlockSpec((B, H), lambda l, n: (0, 0)),
                # Per-(layer, tile) weight slab, squeezed layer dim -> kernel sees (H, TN).
                pl.BlockSpec((pl.Squeezed(), H, tn), lambda l, n: (l, 0, n)),
            ],
            out_specs=pl.BlockSpec((B, H), lambda l, n: (0, 0)),
            scratch_shapes=[
                pltpu.VMEM((B, H), jnp.bfloat16),  # cur: current layer input
                pltpu.VMEM((B, H), jnp.bfloat16),  # nxt: next layer input (built tile-wise)
            ],
        ),
        compiler_params=pltpu.CompilerParams(
            dimension_semantics=("arbitrary", "arbitrary"),
            vmem_limit_bytes=int(vmem_limit),
        ),
    )(x, w_t)


if __name__ == "__main__":
    # Small shapes consistent with the module's forward (x: [batch, hidden],
    # 24 square Linear layers). Original hidden=4096; scaled down to 512.
    B, H, L = 128, 512, 24
    TN = 256  # exercise the output-feature tiling (2 tiles per layer)

    key = jax.random.PRNGKey(0)
    kx, kw = jax.random.split(key)
    x = jax.random.normal(kx, (B, H), dtype=jnp.float32)
    # Small init scale so 24 stacked matmuls stay numerically tame.
    weights = jax.random.normal(kw, (L, H, H), dtype=jnp.float32) * (1.0 / jnp.sqrt(H))

    out = mlp_model_forward(x, weights, tn=TN)
    out = jax.block_until_ready(out)

    # Pure-JAX reference with matched quantization: bf16 weights/activations,
    # fp32 accumulation per layer, final layer kept in fp32 (same as the kernel).
    w_t = jnp.transpose(weights, (0, 2, 1)).astype(jnp.bfloat16)
    act = x.astype(jnp.bfloat16)
    y = None
    for l in range(L):
        y = jnp.dot(act, w_t[l], preferred_element_type=jnp.float32)
        act = y.astype(jnp.bfloat16)
    ref = jax.block_until_ready(y.astype(x.dtype))

    assert out.shape == (B, H)
    err = float(jnp.max(jnp.abs(out - ref)))
    scale = float(jnp.max(jnp.abs(ref))) + 1e-6
    assert err <= 1e-2 * scale + 1e-2, (err, scale)
    print("KERNEL_OK")
</pallas_src>

<mosaic_0001>
module attributes {stable_mosaic.version = 11 : i64} {
  func.func @_mlp_chain_kernel(%arg0: i32, %arg1: i32, %arg2: memref<128x512xf32, #tpu.memory_space<vmem>>, %arg3: memref<1x512x256xbf16, #tpu.memory_space<vmem>>, %arg4: memref<128x512xf32, #tpu.memory_space<vmem>>, %arg5: memref<128x512xbf16, #tpu.memory_space<vmem>>, %arg6: memref<128x512xbf16, #tpu.memory_space<vmem>>) attributes {dimension_semantics = [#tpu.dimension_semantics<arbitrary>, #tpu.dimension_semantics<arbitrary>], iteration_bounds = array<i64: 24, 2>, scalar_prefetch = 0 : i64, scratch_operands = 2 : i64, tpu.core_type = #tpu.core_type<tc>, window_params = [{pipeline_mode = #tpu.pipeline_mode<synchronous>, transform_indices = @transform_0, window_bounds = array<i64: 128, 512>}, {transform_indices = @transform_1, window_bounds = array<i64: 1, 512, 256>}, {pipeline_mode = #tpu.pipeline_mode<synchronous>, transform_indices = @transform_2, window_bounds = array<i64: 128, 512>}]} {
    %c0_i32 = arith.constant 0 : i32
    %0 = arith.cmpi eq, %arg1, %c0_i32 : i32
    %c0_i32_0 = arith.constant 0 : i32
    %1 = arith.cmpi eq, %arg0, %c0_i32_0 : i32
    %2 = arith.andi %0, %1 : i1
    %3 = arith.extui %2 : i1 to i32
    %c0_i32_1 = arith.constant 0 : i32
    %4 = arith.cmpi ne, %3, %c0_i32_1 : i32
    scf.if %4 {
      %c0_11 = arith.constant 0 : index
      %c0_12 = arith.constant 0 : index
      %22 = vector.load %arg2[%c0_11, %c0_12] : memref<128x512xf32, #tpu.memory_space<vmem>>, vector<128x512xf32>
      %23 = arith.truncf %22 : vector<128x512xf32> to vector<128x512xbf16>
      %c0_13 = arith.constant 0 : index
      %c0_14 = arith.constant 0 : index
      %24 = vector.load %arg5[%c0_13, %c0_14] : memref<128x512xbf16, #tpu.memory_space<vmem>>, vector<128x512xbf16>
      tpu.vector_store %arg5[%c0_13, %c0_14], %23 {strides = array<i32>} : memref<128x512xbf16, #tpu.memory_space<vmem>>, vector<128x512xbf16>,
    } else {
    }
    %c0_i32_2 = arith.constant 0 : i32
    %5 = arith.cmpi eq, %arg1, %c0_i32_2 : i32
    %c0_i32_3 = arith.constant 0 : i32
    %6 = arith.cmpi sgt, %arg0, %c0_i32_3 : i32
    %7 = arith.andi %5, %6 : i1
    %8 = arith.extui %7 : i1 to i32
    %c0_i32_4 = arith.constant 0 : i32
    %9 = arith.cmpi ne, %8, %c0_i32_4 : i32
    scf.if %9 {
      %c0_11 = arith.constant 0 : index
      %c0_12 = arith.constant 0 : index
      %22 = vector.load %arg6[%c0_11, %c0_12] : memref<128x512xbf16, #tpu.memory_space<vmem>>, vector<128x512xbf16>
      %c0_13 = arith.constant 0 : index
      %c0_14 = arith.constant 0 : index
      %23 = vector.load %arg5[%c0_13, %c0_14] : memref<128x512xbf16, #tpu.memory_space<vmem>>, vector<128x512xbf16>
      tpu.vector_store %arg5[%c0_13, %c0_14], %22 {strides = array<i32>} : memref<128x512xbf16, #tpu.memory_space<vmem>>, vector<128x512xbf16>,
    } else {
    }
    %c0 = arith.constant 0 : index
    %c0_5 = arith.constant 0 : index
    %10 = vector.load %arg5[%c0, %c0_5] : memref<128x512xbf16, #tpu.memory_space<vmem>>, vector<128x512xbf16>
    %c0_6 = arith.constant 0 : index
    %c0_7 = arith.constant 0 : index
    %c0_8 = arith.constant 0 : index
    %11 = vector.load %arg3[%c0_6, %c0_7, %c0_8] : memref<1x512x256xbf16, #tpu.memory_space<vmem>>, vector<1x512x256xbf16>
    %12 = vector.shape_cast %11 : vector<1x512x256xbf16> to vector<512x256xbf16>
    %cst = arith.constant dense<0.000000e+00> : vector<128x256xf32>
    %13 = tpu.matmul %10, %12, %cst {dimension_numbers = #tpu.dot_dimension_numbers<[1], [0], [0], [1], [0, 0, 1, 1], [], []>} : vector<128x512xbf16>, vector<512x256xbf16>, vector<128x256xf32> -> vector<128x256xf32>
    %c256_i32 = arith.constant 256 : i32
    %14 = arith.muli %arg1, %c256_i32 : i32
    %15 = tpu.assume_multiple %14, 256 : i32
    %c23_i32 = arith.constant 23 : i32
    %16 = arith.cmpi eq, %arg0, %c23_i32 : i32
    %true = arith.constant true
    %17 = arith.xori %16, %true : i1
    %18 = arith.extui %17 : i1 to i32
    %c0_i32_9 = arith.constant 0 : i32
    %19 = arith.cmpi ne, %18, %c0_i32_9 : i32
    scf.if %19 {
      %22 = arith.truncf %13 : vector<128x256xf32> to vector<128x256xbf16>
      %c0_11 = arith.constant 0 : index
      %23 = arith.index_cast %15 : i32 to index
      %24 = vector.load %arg6[%c0_11, %23] : memref<128x512xbf16, #tpu.memory_space<vmem>>, vector<128x256xbf16>
      tpu.vector_store %arg6[%c0_11, %23], %22 {strides = array<i32>} : memref<128x512xbf16, #tpu.memory_space<vmem>>, vector<128x256xbf16>,
    } else {
    }
    %20 = arith.extui %16 : i1 to i32
    %c0_i32_10 = arith.constant 0 : i32
    %21 = arith.cmpi ne, %20, %c0_i32_10 : i32
    scf.if %21 {
      %c0_11 = arith.constant 0 : index
      %22 = arith.index_cast %15 : i32 to index
      %23 = vector.load %arg4[%c0_11, %22] : memref<128x512xf32, #tpu.memory_space<vmem>>, vector<128x256xf32>
      tpu.vector_store %arg4[%c0_11, %22], %13 {strides = array<i32>} : memref<128x512xf32, #tpu.memory_space<vmem>>, vector<128x256xf32>,
    } else {
    }
    return
  }
  func.func @transform_0(%arg0: i32, %arg1: i32) -> (i32, i32) {
    %c0_i32 = arith.constant 0 : i32
    %c0_i32_0 = arith.constant 0 : i32
    %c0_i32_1 = arith.constant 0 : i32
    return %c0_i32, %c0_i32_0 : i32, i32
  }
  func.func @transform_1(%arg0: i32, %arg1: i32) -> (i32, i32, i32) {
    %c0_i32 = arith.constant 0 : i32
    %c0_i32_0 = arith.constant 0 : i32
    return %arg0, %c0_i32, %arg1 : i32, i32, i32
  }
  func.func @transform_2(%arg0: i32, %arg1: i32) -> (i32, i32) {
    %c0_i32 = arith.constant 0 : i32
    %c0_i32_0 = arith.constant 0 : i32
    %c0_i32_1 = arith.constant 0 : i32
    return %c0_i32, %c0_i32_0 : i32, i32
  }
}

</mosaic_0001>

<llo_original>
// kernel: tpu_custom_call.1
$region0: #{tpu_custom_call.1}
  #allocation0 [shape = 'u32[]', space=smem, size = 0x4, offset = 0x4, fixed_abs, tag = 'smem constant byte address 0x4 - core index']
  #allocation1 [shape = 'u32[144,128]{1,0:T(1,128)}', space=vmem, size = 0x12000, scoped, tag = 'internal scratch']
  #allocation2 [shape = 'bf16[128,512]{1,0:T(8,128)(2,1)}', space=vmem, size = 0x20000, scoped, tag = 'scratch operand']
  #allocation3 [shape = 'bf16[128,512]{1,0:T(8,128)(2,1)}', space=vmem, size = 0x20000, scoped, tag = 'scratch operand']
  %s0 = inlined_call_operand.hbm [shape: f32[128,512], index: 0, kind: input, shape index: {}]
  %s1 = inlined_call_operand.hbm [shape: bf16[24,512,512], index: 1, kind: input, shape index: {}]
  %s2 = inlined_call_operand.hbm [shape: f32[128,512], index: 2, kind: output, shape index: {}]
  %s3 = sld [smem:[#allocation0]]
  $region65: #{tpu_custom_call.1} parent=0
    _
  %s5 = ssub.s32 1, %s3
  %s6 = scalar_select 0, %s5, %s3
  $region1: #{tpu_custom_call.1} parent=0
    #allocation4 [shape = 'u8[262144]{0}', space=vmem, size = 0x40000, scoped, tag = 'input window, operand 0, single buffered']
    #allocation5 [shape = 's32[2]{0}', space=sflag, size = 0x8, scoped, tag = 'scoped memory for tpu_custom_call.1']
    #allocation6 [shape = 's32[2]{0}', space=sflag, size = 0x8, scoped, tag = 'scoped memory for tpu_custom_call.1']
    #allocation7 [shape = 'u8[524288]{0}', space=vmem, size = 0x80000, scoped, tag = 'input window, operand 1']
    #allocation8 [shape = 's32[2]{0}', space=sflag, size = 0x8, scoped, tag = 'scoped memory for tpu_custom_call.1']
    #allocation9 [shape = 'u8[262144]{0}', space=vmem, size = 0x40000, scoped, tag = 'output window, operand 0, single buffered']
    %7 = vsyncpa [#allocation5], 0
    %8 = vsyncpa [#allocation8], 0
    %s9 = scalar_lea.sflag [#allocation8], 1
    %10 = vsyncpa %s9, 0
    %11 = vsyncpa [#allocation6], 0
    loop: start=0, step=1, limit=50
    $region2: #{tpu_custom_call.1} parent=1 // loop_pre_header
      _
    $region3: #{tpu_custom_call.1} parent=1 // loop_header
      %s13 = sphi 0, %s17
      %p14 = scmp.ge.s32.totalorder %s13, 50
      %s20 = sphi 0, %s32
      %s21 = sphi 0, %s28
      %s22 = sphi 0, %s20
      %s23 = sphi 0, %s21
      %s24 = sphi 0, %s22
      %s25 = sphi 0, %s23
      %s33 = sphi 0, %s33
      %s35 = sphi 0, %s33
      %s36 = sphi 0, %s35
      %s50 = sphi 0, %s36
      %s58 = sphi 0, %s60
      %s61 = sphi 0, %s58
      %s62 = sphi 0, %s61
      %s78 = sphi 0, %s62
      %s82 = sphi 0, %s82
      %s84 = sphi 0, %s82
      %s85 = sphi 0, %s84
      %s99 = sphi 0, %s85
    $region4: #{tpu_custom_call.1} parent=1 // loop_header_branch
      %16 = sbr.rel (%p14) target = $region8
    $region5: #{tpu_custom_call.1} parent=1 // loop_body
      %s18 = ssub.s32 %s13, 1
      %s19 = ssub.s32 %s13, 2
      %s26 = sadd.s32 1, %s21
      %p27 = scmp.ge.s32.totalorder %s26, 2
      %s28 = scalar_select %p27, 0, %s26
      %s29 = sadd.s32 1, %s20
      %s30 = scalar_select %p27, %s29, %s20
      %p31 = scmp.ge.s32.totalorder %s30, 24
      %s32 = scalar_select %p31, 0, %s30
      %s34 = sadd.s32 %s33, 1
      %p37 = scmp.eq.s32.totalorder %s13, 47
      %p38 = scmp.ne.s32.totalorder %s33, %s35
      %p39 = scmp.eq.s32.totalorder %s13, 0
      %p40 = por %p38, %p39
      %p41 = scmp.ne.s32.totalorder %s33, %s35
      %p42 = scmp.eq.s32.totalorder %s18, 47
      %p43 = por %p41, %p42
      %p44 = scmp.ne.s32.totalorder %s35, %s36
      %p45 = scmp.eq.s32.totalorder %s18, 0
      %p46 = por %p44, %p45
      %p47 = scmp.ne.s32.totalorder %s35, %s36
      %p48 = scmp.eq.s32.totalorder %s19, 47
      %p49 = por %p47, %p48
      %p51 = scmp.ne.s32.totalorder %s36, %s50
      %p52 = scmp.eq.s32.totalorder %s19, 0
      %p53 = por %p51, %p52
      %s54 = ssub.s32 %s20, %s32
      %s55 = ssub.s32 %s21, %s28
      %s56 = sor.u32 %s54, %s55
      %p57 = scmp.eq.s32.totalorder %s56, 0
      %s59 = sadd.s32 %s58, 1
      %s60 = scalar_select %p57, %s58, %s59
      %p63 = pneg %p57
      %p64 = scmp.eq.s32.totalorder %s13, 47
      %p65 = por %p63, %p64
      %p66 = scmp.ne.s32.totalorder %s58, %s61
      %p67 = scmp.eq.s32.totalorder %s13, 0
      %p68 = por %p66, %p67
      %p69 = scmp.ne.s32.totalorder %s58, %s61
      %p70 = scmp.eq.s32.totalorder %s18, 47
      %p71 = por %p69, %p70
      %p72 = scmp.ne.s32.totalorder %s61, %s62
      %p73 = scmp.eq.s32.totalorder %s18, 0
      %p74 = por %p72, %p73
      %p75 = scmp.ne.s32.totalorder %s61, %s62
      %p76 = scmp.eq.s32.totalorder %s19, 47
      %p77 = por %p75, %p76
      %p79 = scmp.ne.s32.totalorder %s62, %s78
      %p80 = scmp.eq.s32.totalorder %s19, 0
      %p81 = por %p79, %p80
      %s83 = sadd.s32 %s82, 1
      %p86 = scmp.eq.s32.totalorder %s13, 47
      %p87 = scmp.ne.s32.totalorder %s82, %s84
      %p88 = scmp.eq.s32.totalorder %s13, 0
      %p89 = por %p87, %p88
      %p90 = scmp.ne.s32.totalorder %s82, %s84
      %p91 = scmp.eq.s32.totalorder %s18, 47
      %p92 = por %p90, %p91
      %p93 = scmp.ne.s32.totalorder %s84, %s85
      %p94 = scmp.eq.s32.totalorder %s18, 0
      %p95 = por %p93, %p94
      %p96 = scmp.ne.s32.totalorder %s84, %s85
      %p97 = scmp.eq.s32.totalorder %s19, 47
      %p98 = por %p96, %p97
      %p100 = scmp.ne.s32.totalorder %s85, %s99
      %p101 = scmp.eq.s32.totalorder %s19, 0
      %p102 = por %p100, %p101
      %p103 = scmp.le.s32.totalorder 1, %s13
      %p104 = scmp.lt.s32.totalorder %s13, 49
      %p105 = pnand %p103, %p104
      %p106 = pneg %p105
      // Predicated region
      $region9: #{tpu_custom_call.1} parent=5 // pred_check
        _
      $region10: #{tpu_custom_call.1} parent=5 // pred_check_branch
        %108 = sbr.rel (%p105) target = $region12
      $region11: #{tpu_custom_call.1} parent=5 // pred_region
        %s109 = ssub.s32 %s13, 1
        // Predicated region
        $region13: #{tpu_custom_call.1} parent=11 // pred_check
          %p110 = pneg %p46
        $region14: #{tpu_custom_call.1} parent=11 // pred_check_branch
          %112 = sbr.rel (%p110) target = $region16
        $region15: #{tpu_custom_call.1} parent=11 // pred_region
          %s114 = ssub.s32 8192, 8192
          %115 = vsyncadd [#allocation5], %s114
          %s116 = sshll.u32 [#allocation4], 4
          %s117 = int_to_ptr.vmem [resolvable:$true] %s116
          %122 = dma.hbm_to_vmem [thread:$0]  %s0, 8192, %s117, [#allocation5], 512, 512, 32
        $region16: #{tpu_custom_call.1} parent=11 // pred_fallthru
          _
      $region12: #{tpu_custom_call.1} parent=5 // pred_fallthru
        _
      %p123 = scmp.lt.s32.totalorder %s13, 48
      // Predicated region
      $region17: #{tpu_custom_call.1} parent=5 // pred_check
        %p124 = pneg %p123
      $region18: #{tpu_custom_call.1} parent=5 // pred_check_branch
        %126 = sbr.rel (%p124) target = $region20
      $region19: #{tpu_custom_call.1} parent=5 // pred_region
        // Predicated region
        $region21: #{tpu_custom_call.1} parent=19 // pred_check
          %p127 = pneg %p68
        $region22: #{tpu_custom_call.1} parent=19 // pred_check_branch
          %129 = sbr.rel (%p127) target = $region24
        $region23: #{tpu_custom_call.1} parent=19 // pred_region
          %s130 = sand.u32 %s58, 1
          %s131 = scalar_lea.sflag [#allocation8], %s130
          %s132 = sand.u32 %s58, 1
          %s133 = smul.addr %s132, 512
          %s134 = scalar_lea.vmem [#allocation7], %s133
          %s135 = smul.u32 2, %s21
          %s137 = ssub.s32 8192, 8192
          %138 = vsyncadd %s131, %s137
          %s139 = smul.addr %s20, 256
          %s140 = sadd.s32 %s135, %s139
          %s141 = smul.addr %s140, 64
          %s142 = scalar_lea.hbm %s1, %s141
          %s143 = sshll.u32 %s134, 4
          %s144 = int_to_ptr.vmem [resolvable:$true] %s143
          %149 = dma.hbm_to_vmem [thread:$0]  %s142, 8192, %s144, %s131, 256, 128, 8
        $region24: #{tpu_custom_call.1} parent=19 // pred_fallthru
          _
      $region20: #{tpu_custom_call.1} parent=5 // pred_fallthru
        _
      %p150 = scmp.le.s32.totalorder 1, %s13
      %p151 = scmp.lt.s32.totalorder %s13, 49
      %p152 = pnand %p150, %p151
      %p153 = pneg %p152
      // Predicated region
      $region25: #{tpu_custom_call.1} parent=5 // pred_check
        _
      $region26: #{tpu_custom_call.1} parent=5 // pred_check_branch
        %155 = sbr.rel (%p152) target = $region28
      $region27: #{tpu_custom_call.1} parent=5 // pred_region
        %s156 = ssub.s32 %s13, 1
        // Predicated region
        $region29: #{tpu_custom_call.1} parent=27 // pred_check
          %p157 = pneg %p46
        $region30: #{tpu_custom_call.1} parent=27 // pred_check_branch
          %159 = sbr.rel (%p157) target = $region32
        $region31: #{tpu_custom_call.1} parent=27 // pred_region
          %160 = dma.done [#allocation5], 8192
        $region32: #{tpu_custom_call.1} parent=27 // pred_fallthru
          _
        %s161 = sand.u32 %s61, 1
        %s162 = scalar_lea.sflag [#allocation8], %s161
        %s163 = sand.u32 %s61, 1
        %s164 = smul.addr %s163, 512
        %s165 = scalar_lea.vmem [#allocation7], %s164
        // Predicated region
        $region33: #{tpu_custom_call.1} parent=27 // pred_check
          %p166 = pneg %p74
        $region34: #{tpu_custom_call.1} parent=27 // pred_check_branch
          %168 = sbr.rel (%p166) target = $region36
        $region35: #{tpu_custom_call.1} parent=27 // pred_region
          %169 = dma.done %s162, 8192
        $region36: #{tpu_custom_call.1} parent=27 // pred_fallthru
          _
        %p170 = pneg %p46
        %p171 = pneg %p43
        %s172 = sand.u32 %s61, 1
        %s173 = scalar_lea.sflag [#allocation8], %s172
        %s174 = sand.u32 %s61, 1
        %s175 = smul.addr %s174, 512
        %s176 = scalar_lea.vmem [#allocation7], %s175
        %p177 = pneg %p74
        %p178 = pneg %p71
        %p179 = pneg %p95
        %p180 = pneg %p92
        %s181 = smul.u32 2, %s23
        %p182 = scmp.eq.s32.totalorder %s23, 0
        %p183 = scmp.eq.s32.totalorder %s22, 0
        %p184 = pnand %p182, %p183
        %p185 = pneg %p184
        // Predicated region
        $region37: #{tpu_custom_call.1} parent=27 // pred_check
          _
        $region38: #{tpu_custom_call.1} parent=27 // pred_check_branch
          %187 = sbr.rel (%p184) target = $region40
        $region39: #{tpu_custom_call.1} parent=27 // pred_region
          %v188 = vld [vmem:[#allocation4] sm:$0xff]
          %v189 = vld [vmem:[#allocation4 + $0x8] sm:$0xff]
          %v190 = vld [vmem:[#allocation4 + $0x10] sm:$0xff]
          %v191 = vld [vmem:[#allocation4 + $0x18] sm:$0xff]
          %v192 = vld [vmem:[#allocation4 + $0x20] sm:$0xff]
          %v193 = vld [vmem:[#allocation4 + $0x28] sm:$0xff]
          %v194 = vld [vmem:[#allocation4 + $0x30] sm:$0xff]
          %v195 = vld [vmem:[#allocation4 + $0x38] sm:$0xff]
          %v196 = vld [vmem:[#allocation4 + $0x40] sm:$0xff]
          %v197 = vld [vmem:[#allocation4 + $0x48] sm:$0xff]
          %v198 = vld [vmem:[#allocation4 + $0x50] sm:$0xff]
          %v199 = vld [vmem:[#allocation4 + $0x58] sm:$0xff]
          %v200 = vld [vmem:[#allocation4 + $0x60] sm:$0xff]
          %v201 = vld [vmem:[#allocation4 + $0x68] sm:$0xff]
          %v202 = vld [vmem:[#allocation4 + $0x70] sm:$0xff]
          %v203 = vld [vmem:[#allocation4 + $0x78] sm:$0xff]
          %v204 = vld [vmem:[#allocation4 + $0x80] sm:$0xff]
          %v205 = vld [vmem:[#allocation4 + $0x88] sm:$0xff]
          %v206 = vld [vmem:[#allocation4 + $0x90] sm:$0xff]
          %v207 = vld [vmem:[#allocation4 + $0x98] sm:$0xff]
          %v208 = vld [vmem:[#allocation4 + $0xa0] sm:$0xff]
          %v209 = vld [vmem:[#allocation4 + $0xa8] sm:$0xff]
          %v210 = vld [vmem:[#allocation4 + $0xb0] sm:$0xff]
          %v211 = vld [vmem:[#allocation4 + $0xb8] sm:$0xff]
          %v212 = vld [vmem:[#allocation4 + $0xc0] sm:$0xff]
          %v213 = vld [vmem:[#allocation4 + $0xc8] sm:$0xff]
          %v214 = vld [vmem:[#allocation4 + $0xd0] sm:$0xff]
          %v215 = vld [vmem:[#allocation4 + $0xd8] sm:$0xff]
          %v216 = vld [vmem:[#allocation4 + $0xe0] sm:$0xff]
          %v217 = vld [vmem:[#allocation4 + $0xe8] sm:$0xff]
          %v218 = vld [vmem:[#allocation4 + $0xf0] sm:$0xff]
          %v219 = vld [vmem:[#allocation4 + $0xf8] sm:$0xff]
          %v220 = vld [vmem:[#allocation4 + $0x100] sm:$0xff]
          %v221 = vld [vmem:[#allocation4 + $0x108] sm:$0xff]
          %v222 = vld [vmem:[#allocation4 + $0x110] sm:$0xff]
          %v223 = vld [vmem:[#allocation4 + $0x118] sm:$0xff]
          %v224 = vld [vmem:[#allocation4 + $0x120] sm:$0xff]
          %v225 = vld [vmem:[#allocation4 + $0x128] sm:$0xff]
          %v226 = vld [vmem:[#allocation4 + $0x130] sm:$0xff]
          %v227 = vld [vmem:[#allocation4 + $0x138] sm:$0xff]
          %v228 = vld [vmem:[#allocation4 + $0x140] sm:$0xff]
          %v229 = vld [vmem:[#allocation4 + $0x148] sm:$0xff]
          %v230 = vld [vmem:[#allocation4 + $0x150] sm:$0xff]
          %v231 = vld [vmem:[#allocation4 + $0x158] sm:$0xff]
          %v232 = vld [vmem:[#allocation4 + $0x160] sm:$0xff]
          %v233 = vld [vmem:[#allocation4 + $0x168] sm:$0xff]
          %v234 = vld [vmem:[#allocation4 + $0x170] sm:$0xff]
          %v235 = vld [vmem:[#allocation4 + $0x178] sm:$0xff]
          %v236 = vld [vmem:[#allocation4 + $0x180] sm:$0xff]
          %v237 = vld [vmem:[#allocation4 + $0x188] sm:$0xff]
          %v238 = vld [vmem:[#allocation4 + $0x190] sm:$0xff]
          %v239 = vld [vmem:[#allocation4 + $0x198] sm:$0xff]
          %v240 = vld [vmem:[#allocation4 + $0x1a0] sm:$0xff]
          %v241 = vld [vmem:[#allocation4 + $0x1a8] sm:$0xff]
          %v242 = vld [vmem:[#allocation4 + $0x1b0] sm:$0xff]
          %v243 = vld [vmem:[#allocation4 + $0x1b8] sm:$0xff]
          %v244 = vld [vmem:[#allocation4 + $0x1c0] sm:$0xff]
          %v245 = vld [vmem:[#allocation4 + $0x1c8] sm:$0xff]
          %v246 = vld [vmem:[#allocation4 + $0x1d0] sm:$0xff]
          %v247 = vld [vmem:[#allocation4 + $0x1d8] sm:$0xff]
          %v248 = vld [vmem:[#allocation4 + $0x1e0] sm:$0xff]
          %v249 = vld [vmem:[#allocation4 + $0x1e8] sm:$0xff]
          %v250 = vld [vmem:[#allocation4 + $0x1f0] sm:$0xff]
          %v251 = vld [vmem:[#allocation4 + $0x1f8] sm:$0xff]
          %v252 = vpack.c.bf16 %v192, %v188
          %v253 = vpack.c.bf16 %v193, %v189
          %v254 = vpack.c.bf16 %v194, %v190
          %v255 = vpack.c.bf16 %v195, %v191
          %v256 = vpack.c.bf16 %v200, %v196
          %v257 = vpack.c.bf16 %v201, %v197
          %v258 = vpack.c.bf16 %v202, %v198
          %v259 = vpack.c.bf16 %v203, %v199
          %v260 = vpack.c.bf16 %v208, %v204
          %v261 = vpack.c.bf16 %v209, %v205
          %v262 = vpack.c.bf16 %v210, %v206
          %v263 = vpack.c.bf16 %v211, %v207
          %v264 = vpack.c.bf16 %v216, %v212
          %v265 = vpack.c.bf16 %v217, %v213
          %v266 = vpack.c.bf16 %v218, %v214
          %v267 = vpack.c.bf16 %v219, %v215
          %v268 = vpack.c.bf16 %v224, %v220
          %v269 = vpack.c.bf16 %v225, %v221
          %v270 = vpack.c.bf16 %v226, %v222
          %v271 = vpack.c.bf16 %v227, %v223
          %v272 = vpack.c.bf16 %v232, %v228
          %v273 = vpack.c.bf16 %v233, %v229
          %v274 = vpack.c.bf16 %v234, %v230
          %v275 = vpack.c.bf16 %v235, %v231
          %v276 = vpack.c.bf16 %v240, %v236
          %v277 = vpack.c.bf16 %v241, %v237
          %v278 = vpack.c.bf16 %v242, %v238
          %v279 = vpack.c.bf16 %v243, %v239
          %v280 = vpack.c.bf16 %v248, %v244
          %v281 = vpack.c.bf16 %v249, %v245
          %v282 = vpack.c.bf16 %v250, %v246
          %v283 = vpack.c.bf16 %v251, %v247
          %v316 = vunpack.c.l.b16 %v252
          %v317 = vunpack.c.l.b16 %v253
          %v318 = vunpack.c.l.b16 %v254
          %v319 = vunpack.c.l.b16 %v255
          %v320 = vunpack.c.h.b16 %v252
          %v321 = vunpack.c.h.b16 %v253
          %v322 = vunpack.c.h.b16 %v254
          %v323 = vunpack.c.h.b16 %v255
          %v324 = vunpack.c.l.b16 %v256
          %v325 = vunpack.c.l.b16 %v257
          %v326 = vunpack.c.l.b16 %v258
          %v327 = vunpack.c.l.b16 %v259
          %v328 = vunpack.c.h.b16 %v256
          %v329 = vunpack.c.h.b16 %v257
          %v330 = vunpack.c.h.b16 %v258
          %v331 = vunpack.c.h.b16 %v259
          %v332 = vunpack.c.l.b16 %v260
          %v333 = vunpack.c.l.b16 %v261
          %v334 = vunpack.c.l.b16 %v262
          %v335 = vunpack.c.l.b16 %v263
          %v336 = vunpack.c.h.b16 %v260
          %v337 = vunpack.c.h.b16 %v261
          %v338 = vunpack.c.h.b16 %v262
          %v339 = vunpack.c.h.b16 %v263
          %v340 = vunpack.c.l.b16 %v264
          %v341 = vunpack.c.l.b16 %v265
          %v342 = vunpack.c.l.b16 %v266
          %v343 = vunpack.c.l.b16 %v267
          %v344 = vunpack.c.h.b16 %v264
          %v345 = vunpack.c.h.b16 %v265
          %v346 = vunpack.c.h.b16 %v266
          %v347 = vunpack.c.h.b16 %v267
          %v348 = vunpack.c.l.b16 %v268
          %v349 = vunpack.c.l.b16 %v269
          %v350 = vunpack.c.l.b16 %v270
          %v351 = vunpack.c.l.b16 %v271
          %v352 = vunpack.c.h.b16 %v268
          %v353 = vunpack.c.h.b16 %v269
          %v354 = vunpack.c.h.b16 %v270
          %v355 = vunpack.c.h.b16 %v271
          %v356 = vunpack.c.l.b16 %v272
          %v357 = vunpack.c.l.b16 %v273
          %v358 = vunpack.c.l.b16 %v274
          %v359 = vunpack.c.l.b16 %v275
          %v360 = vunpack.c.h.b16 %v272
          %v361 = vunpack.c.h.b16 %v273
          %v362 = vunpack.c.h.b16 %v274
          %v363 = vunpack.c.h.b16 %v275
          %v364 = vunpack.c.l.b16 %v276
          %v365 = vunpack.c.l.b16 %v277
          %v366 = vunpack.c.l.b16 %v278
          %v367 = vunpack.c.l.b16 %v279
          %v368 = vunpack.c.h.b16 %v276
          %v369 = vunpack.c.h.b16 %v277
          %v370 = vunpack.c.h.b16 %v278
          %v371 = vunpack.c.h.b16 %v279
          %v372 = vunpack.c.l.b16 %v280
          %v373 = vunpack.c.l.b16 %v281
          %v374 = vunpack.c.l.b16 %v282
          %v375 = vunpack.c.l.b16 %v283
          %v376 = vunpack.c.h.b16 %v280
          %v377 = vunpack.c.h.b16 %v281
          %v378 = vunpack.c.h.b16 %v282
          %v379 = vunpack.c.h.b16 %v283
          %v380 = vpack.c.b16 %v317, %v316
          %v381 = vpack.c.b16 %v319, %v318
          %v382 = vpack.c.b16 %v321, %v320
          %v383 = vpack.c.b16 %v323, %v322
          %v384 = vpack.c.b16 %v325, %v324
          %v385 = vpack.c.b16 %v327, %v326
          %v386 = vpack.c.b16 %v329, %v328
          %v387 = vpack.c.b16 %v331, %v330
          %v388 = vpack.c.b16 %v333, %v332
          %v389 = vpack.c.b16 %v335, %v334
          %v390 = vpack.c.b16 %v337, %v336
          %v391 = vpack.c.b16 %v339, %v338
          %v392 = vpack.c.b16 %v341, %v340
          %v393 = vpack.c.b16 %v343, %v342
          %v394 = vpack.c.b16 %v345, %v344
          %v395 = vpack.c.b16 %v347, %v346
          %v396 = vpack.c.b16 %v349, %v348
          %v397 = vpack.c.b16 %v351, %v350
          %v398 = vpack.c.b16 %v353, %v352
          %v399 = vpack.c.b16 %v355, %v354
          %v400 = vpack.c.b16 %v357, %v356
          %v401 = vpack.c.b16 %v359, %v358
          %v402 = vpack.c.b16 %v361, %v360
          %v403 = vpack.c.b16 %v363, %v362
          %v404 = vpack.c.b16 %v365, %v364
          %v405 = vpack.c.b16 %v367, %v366
          %v406 = vpack.c.b16 %v369, %v368
          %v407 = vpack.c.b16 %v371, %v370
          %v408 = vpack.c.b16 %v373, %v372
          %v409 = vpack.c.b16 %v375, %v374
          %v410 = vpack.c.b16 %v377, %v376
          %v411 = vpack.c.b16 %v379, %v378
          %444 = vst [vmem:[#allocation2] sm:$0xff] %v380
          %445 = vst [vmem:[#allocation2 + $0x8] sm:$0xff] %v381
          %446 = vst [vmem:[#allocation2 + $0x10] sm:$0xff] %v382
          %447 = vst [vmem:[#allocation2 + $0x18] sm:$0xff] %v383
          %448 = vst [vmem:[#allocation2 + $0x20] sm:$0xff] %v384
          %449 = vst [vmem:[#allocation2 + $0x28] sm:$0xff] %v385
          %450 = vst [vmem:[#allocation2 + $0x30] sm:$0xff] %v386
          %451 = vst [vmem:[#allocation2 + $0x38] sm:$0xff] %v387
          %452 = vst [vmem:[#allocation2 + $0x40] sm:$0xff] %v388
          %453 = vst [vmem:[#allocation2 + $0x48] sm:$0xff] %v389
          %454 = vst [vmem:[#allocation2 + $0x50] sm:$0xff] %v390
          %455 = vst [vmem:[#allocation2 + $0x58] sm:$0xff] %v391
          %456 = vst [vmem:[#allocation2 + $0x60] sm:$0xff] %v392
          %457 = vst [vmem:[#allocation2 + $0x68] sm:$0xff] %v393
          %458 = vst [vmem:[#allocation2 + $0x70] sm:$0xff] %v394
          %459 = vst [vmem:[#allocation2 + $0x78] sm:$0xff] %v395
          %460 = vst [vmem:[#allocation2 + $0x80] sm:$0xff] %v396
          %461 = vst [vmem:[#allocation2 + $0x88] sm:$0xff] %v397
          %462 = vst [vmem:[#allocation2 + $0x90] sm:$0xff] %v398
          %463 = vst [vmem:[#allocation2 + $0x98] sm:$0xff] %v399
          %464 = vst [vmem:[#allocation2 + $0xa0] sm:$0xff] %v400
          %465 = vst [vmem:[#allocation2 + $0xa8] sm:$0xff] %v401
          %466 = vst [vmem:[#allocation2 + $0xb0] sm:$0xff] %v402
          %467 = vst [vmem:[#allocation2 + $0xb8] sm:$0xff] %v403
          %468 = vst [vmem:[#allocation2 + $0xc0] sm:$0xff] %v404
          %469 = vst [vmem:[#allocation2 + $0xc8] sm:$0xff] %v405
          %470 = vst [vmem:[#allocation2 + $0xd0] sm:$0xff] %v406
          %471 = vst [vmem:[#allocation2 + $0xd8] sm:$0xff] %v407
          %472 = vst [vmem:[#allocation2 + $0xe0] sm:$0xff] %v408
          %473 = vst [vmem:[#allocation2 + $0xe8] sm:$0xff] %v409
          %474 = vst [vmem:[#allocation2 + $0xf0] sm:$0xff] %v410
          %475 = vst [vmem:[#allocation2 + $0xf8] sm:$0xff] %v411
        $region40: #{tpu_custom_call.1} parent=27 // pred_fallthru
          _
        %p476 = scmp.gt.s32.totalorder %s22, 0
        %p477 = pnand %p182, %p476
        %p478 = pneg %p477
        // Predicated region
        $region41: #{tpu_custom_call.1} parent=27 // pred_check
          _
        $region42: #{tpu_custom_call.1} parent=27 // pred_check_branch
          %480 = sbr.rel (%p477) target = $region44
        $region43: #{tpu_custom_call.1} parent=27 // pred_region
          %v481 = vld [vmem:[#allocation3] sm:$0xff]
          %v482 = vld [vmem:[#allocation3 + $0x8] sm:$0xff]
          %v483 = vld [vmem:[#allocation3 + $0x10] sm:$0xff]
          %v484 = vld [vmem:[#allocation3 + $0x18] sm:$0xff]
          %v485 = vld [vmem:[#allocation3 + $0x20] sm:$0xff]
          %v486 = vld [vmem:[#allocation3 + $0x28] sm:$0xff]
          %v487 = vld [vmem:[#allocation3 + $0x30] sm:$0xff]
          %v488 = vld [vmem:[#allocation3 + $0x38] sm:$0xff]
          %v489 = vld [vmem:[#allocation3 + $0x40] sm:$0xff]
          %v490 = vld [vmem:[#allocation3 + $0x48] sm:$0xff]
          %v491 = vld [vmem:[#allocation3 + $0x50] sm:$0xff]
          %v492 = vld [vmem:[#allocation3 + $0x58] sm:$0xff]
          %v493 = vld [vmem:[#allocation3 + $0x60] sm:$0xff]
          %v494 = vld [vmem:[#allocation3 + $0x68] sm:$0xff]
          %v495 = vld [vmem:[#allocation3 + $0x70] sm:$0xff]
          %v496 = vld [vmem:[#allocation3 + $0x78] sm:$0xff]
          %v497 = vld [vmem:[#allocation3 + $0x80] sm:$0xff]
          %v498 = vld [vmem:[#allocation3 + $0x88] sm:$0xff]
          %v499 = vld [vmem:[#allocation3 + $0x90] sm:$0xff]
          %v500 = vld [vmem:[#allocation3 + $0x98] sm:$0xff]
          %v501 = vld [vmem:[#allocation3 + $0xa0] sm:$0xff]
          %v502 = vld [vmem:[#allocation3 + $0xa8] sm:$0xff]
          %v503 = vld [vmem:[#allocation3 + $0xb0] sm:$0xff]
          %v504 = vld [vmem:[#allocation3 + $0xb8] sm:$0xff]
          %v505 = vld [vmem:[#allocation3 + $0xc0] sm:$0xff]
          %v506 = vld [vmem:[#allocation3 + $0xc8] sm:$0xff]
          %v507 = vld [vmem:[#allocation3 + $0xd0] sm:$0xff]
          %v508 = vld [vmem:[#allocation3 + $0xd8] sm:$0xff]
          %v509 = vld [vmem:[#allocation3 + $0xe0] sm:$0xff]
          %v510 = vld [vmem:[#allocation3 + $0xe8] sm:$0xff]
          %v511 = vld [vmem:[#allocation3 + $0xf0] sm:$0xff]
          %v512 = vld [vmem:[#allocation3 + $0xf8] sm:$0xff]
          %513 = vst [vmem:[#allocation2] sm:$0xff] %v481
          %514 = vst [vmem:[#allocation2 + $0x8] sm:$0xff] %v482
          %515 = vst [vmem:[#allocation2 + $0x10] sm:$0xff] %v483
          %516 = vst [vmem:[#allocation2 + $0x18] sm:$0xff] %v484
          %517 = vst [vmem:[#allocation2 + $0x20] sm:$0xff] %v485
          %518 = vst [vmem:[#allocation2 + $0x28] sm:$0xff] %v486
          %519 = vst [vmem:[#allocation2 + $0x30] sm:$0xff] %v487
          %520 = vst [vmem:[#allocation2 + $0x38] sm:$0xff] %v488
          %521 = vst [vmem:[#allocation2 + $0x40] sm:$0xff] %v489
          %522 = vst [vmem:[#allocation2 + $0x48] sm:$0xff] %v490
          %523 = vst [vmem:[#allocation2 + $0x50] sm:$0xff] %v491
          %524 = vst [vmem:[#allocation2 + $0x58] sm:$0xff] %v492
          %525 = vst [vmem:[#allocation2 + $0x60] sm:$0xff] %v493
          %526 = vst [vmem:[#allocation2 + $0x68] sm:$0xff] %v494
          %527 = vst [vmem:[#allocation2 + $0x70] sm:$0xff] %v495
          %528 = vst [vmem:[#allocation2 + $0x78] sm:$0xff] %v496
          %529 = vst [vmem:[#allocation2 + $0x80] sm:$0xff] %v497
          %530 = vst [vmem:[#allocation2 + $0x88] sm:$0xff] %v498
          %531 = vst [vmem:[#allocation2 + $0x90] sm:$0xff] %v499
          %532 = vst [vmem:[#allocation2 + $0x98] sm:$0xff] %v500
          %533 = vst [vmem:[#allocation2 + $0xa0] sm:$0xff] %v501
          %534 = vst [vmem:[#allocation2 + $0xa8] sm:$0xff] %v502
          %535 = vst [vmem:[#allocation2 + $0xb0] sm:$0xff] %v503
          %536 = vst [vmem:[#allocation2 + $0xb8] sm:$0xff] %v504
          %537 = vst [vmem:[#allocation2 + $0xc0] sm:$0xff] %v505
          %538 = vst [vmem:[#allocation2 + $0xc8] sm:$0xff] %v506
          %539 = vst [vmem:[#allocation2 + $0xd0] sm:$0xff] %v507
          %540 = vst [vmem:[#allocation2 + $0xd8] sm:$0xff] %v508
          %541 = vst [vmem:[#allocation2 + $0xe0] sm:$0xff] %v509
          %542 = vst [vmem:[#allocation2 + $0xe8] sm:$0xff] %v510
          %543 = vst [vmem:[#allocation2 + $0xf0] sm:$0xff] %v511
          %544 = vst [vmem:[#allocation2 + $0xf8] sm:$0xff] %v512
        $region44: #{tpu_custom_call.1} parent=27 // pred_fallthru
          _
        %v545 = vld [vmem:[#allocation2] sm:$0xff]
        %v546 = vld [vmem:[#allocation2 + $0x8] sm:$0xff]
        %v547 = vld [vmem:[#allocation2 + $0x10] sm:$0xff]
        %v548 = vld [vmem:[#allocation2 + $0x18] sm:$0xff]
        %v549 = vld [vmem:[#allocation2 + $0x20] sm:$0xff]
        %v550 = vld [vmem:[#allocation2 + $0x28] sm:$0xff]
        %v551 = vld [vmem:[#allocation2 + $0x30] sm:$0xff]
        %v552 = vld [vmem:[#allocation2 + $0x38] sm:$0xff]
        %v553 = vld [vmem:[#allocation2 + $0x40] sm:$0xff]
        %v554 = vld [vmem:[#allocation2 + $0x48] sm:$0xff]
        %v555 = vld [vmem:[#allocation2 + $0x50] sm:$0xff]
        %v556 = vld [vmem:[#allocation2 + $0x58] sm:$0xff]
        %v557 = vld [vmem:[#allocation2 + $0x60] sm:$0xff]
        %v558 = vld [vmem:[#allocation2 + $0x68] sm:$0xff]
        %v559 = vld [vmem:[#allocation2 + $0x70] sm:$0xff]
        %v560 = vld [vmem:[#allocation2 + $0x78] sm:$0xff]
        %v561 = vld [vmem:[#allocation2 + $0x80] sm:$0xff]
        %v562 = vld [vmem:[#allocation2 + $0x88] sm:$0xff]
        %v563 = vld [vmem:[#allocation2 + $0x90] sm:$0xff]
        %v564 = vld [vmem:[#allocation2 + $0x98] sm:$0xff]
        %v565 = vld [vmem:[#allocation2 + $0xa0] sm:$0xff]
        %v566 = vld [vmem:[#allocation2 + $0xa8] sm:$0xff]
        %v567 = vld [vmem:[#allocation2 + $0xb0] sm:$0xff]
        %v568 = vld [vmem:[#allocation2 + $0xb8] sm:$0xff]
        %v569 = vld [vmem:[#allocation2 + $0xc0] sm:$0xff]
        %v570 = vld [vmem:[#allocation2 + $0xc8] sm:$0xff]
        %v571 = vld [vmem:[#allocation2 + $0xd0] sm:$0xff]
        %v572 = vld [vmem:[#allocation2 + $0xd8] sm:$0xff]
        %v573 = vld [vmem:[#allocation2 + $0xe0] sm:$0xff]
        %v574 = vld [vmem:[#allocation2 + $0xe8] sm:$0xff]
        %v575 = vld [vmem:[#allocation2 + $0xf0] sm:$0xff]
        %v576 = vld [vmem:[#allocation2 + $0xf8] sm:$0xff]
        %v577 = vld [vmem:[%s165] sm:$0xff]
        %v578 = vld [vmem:[%s165 + $0x8] sm:$0xff]
        %v579 = vld [vmem:[%s165 + $0x10] sm:$0xff]
        %v580 = vld [vmem:[%s165 + $0x18] sm:$0xff]
        %v581 = vld [vmem:[%s165 + $0x20] sm:$0xff]
        %v582 = vld [vmem:[%s165 + $0x28] sm:$0xff]
        %v583 = vld [vmem:[%s165 + $0x30] sm:$0xff]
        %v584 = vld [vmem:[%s165 + $0x38] sm:$0xff]
        %v585 = vld [vmem:[%s165 + $0x40] sm:$0xff]
        %v586 = vld [vmem:[%s165 + $0x48] sm:$0xff]
        %v587 = vld [vmem:[%s165 + $0x50] sm:$0xff]
        %v588 = vld [vmem:[%s165 + $0x58] sm:$0xff]
        %v589 = vld [vmem:[%s165 + $0x60] sm:$0xff]
        %v590 = vld [vmem:[%s165 + $0x68] sm:$0xff]
        %v591 = vld [vmem:[%s165 + $0x70] sm:$0xff]
        %v592 = vld [vmem:[%s165 + $0x78] sm:$0xff]
        %v593 = vld [vmem:[%s165 + $0x80] sm:$0xff]
        %v594 = vld [vmem:[%s165 + $0x88] sm:$0xff]
        %v595 = vld [vmem:[%s165 + $0x90] sm:$0xff]
        %v596 = vld [vmem:[%s165 + $0x98] sm:$0xff]
        %v597 = vld [vmem:[%s165 + $0xa0] sm:$0xff]
        %v598 = vld [vmem:[%s165 + $0xa8] sm:$0xff]
        %v599 = vld [vmem:[%s165 + $0xb0] sm:$0xff]
        %v600 = vld [vmem:[%s165 + $0xb8] sm:$0xff]
        %v601 = vld [vmem:[%s165 + $0xc0] sm:$0xff]
        %v602 = vld [vmem:[%s165 + $0xc8] sm:$0xff]
        %v603 = vld [vmem:[%s165 + $0xd0] sm:$0xff]
        %v604 = vld [vmem:[%s165 + $0xd8] sm:$0xff]
        %v605 = vld [vmem:[%s165 + $0xe0] sm:$0xff]
        %v606 = vld [vmem:[%s165 + $0xe8] sm:$0xff]
        %v607 = vld [vmem:[%s165 + $0xf0] sm:$0xff]
        %v608 = vld [vmem:[%s165 + $0xf8] sm:$0xff]
        %v609 = vld [vmem:[%s165 + $0x100] sm:$0xff]
        %v610 = vld [vmem:[%s165 + $0x108] sm:$0xff]
        %v611 = vld [vmem:[%s165 + $0x110] sm:$0xff]
        %v612 = vld [vmem:[%s165 + $0x118] sm:$0xff]
        %v613 = vld [vmem:[%s165 + $0x120] sm:$0xff]
        %v614 = vld [vmem:[%s165 + $0x128] sm:$0xff]
        %v615 = vld [vmem:[%s165 + $0x130] sm:$0xff]
        %v616 = vld [vmem:[%s165 + $0x138] sm:$0xff]
        %v617 = vld [vmem:[%s165 + $0x140] sm:$0xff]
        %v618 = vld [vmem:[%s165 + $0x148] sm:$0xff]
        %v619 = vld [vmem:[%s165 + $0x150] sm:$0xff]
        %v620 = vld [vmem:[%s165 + $0x158] sm:$0xff]
        %v621 = vld [vmem:[%s165 + $0x160] sm:$0xff]
        %v622 = vld [vmem:[%s165 + $0x168] sm:$0xff]
        %v623 = vld [vmem:[%s165 + $0x170] sm:$0xff]
        %v624 = vld [vmem:[%s165 + $0x178] sm:$0xff]
        %v625 = vld [vmem:[%s165 + $0x180] sm:$0xff]
        %v626 = vld [vmem:[%s165 + $0x188] sm:$0xff]
        %v627 = vld [vmem:[%s165 + $0x190] sm:$0xff]
        %v628 = vld [vmem:[%s165 + $0x198] sm:$0xff]
        %v629 = vld [vmem:[%s165 + $0x1a0] sm:$0xff]
        %v630 = vld [vmem:[%s165 + $0x1a8] sm:$0xff]
        %v631 = vld [vmem:[%s165 + $0x1b0] sm:$0xff]
        %v632 = vld [vmem:[%s165 + $0x1b8] sm:$0xff]
        %v633 = vld [vmem:[%s165 + $0x1c0] sm:$0xff]
        %v634 = vld [vmem:[%s165 + $0x1c8] sm:$0xff]
        %v635 = vld [vmem:[%s165 + $0x1d0] sm:$0xff]
        %v636 = vld [vmem:[%s165 + $0x1d8] sm:$0xff]
        %v637 = vld [vmem:[%s165 + $0x1e0] sm:$0xff]
        %v638 = vld [vmem:[%s165 + $0x1e8] sm:$0xff]
        %v639 = vld [vmem:[%s165 + $0x1f0] sm:$0xff]
        %v640 = vld [vmem:[%s165 + $0x1f8] sm:$0xff]
        %v673 = vunpack.c.l.b16 %v545
        %v674 = vunpack.c.h.b16 %v545
        %v675 = vunpack.c.l.b16 %v546
        %v676 = vunpack.c.h.b16 %v546
        %v677 = vunpack.c.l.b16 %v547
        %v678 = vunpack.c.h.b16 %v547
        %v679 = vunpack.c.l.b16 %v548
        %v680 = vunpack.c.h.b16 %v548
        %v681 = vunpack.c.l.b16 %v549
        %v682 = vunpack.c.h.b16 %v549
        %v683 = vunpack.c.l.b16 %v550
        %v684 = vunpack.c.h.b16 %v550
        %v685 = vunpack.c.l.b16 %v551
        %v686 = vunpack.c.h.b16 %v551
        %v687 = vunpack.c.l.b16 %v552
        %v688 = vunpack.c.h.b16 %v552
        %v689 = vunpack.c.l.b16 %v553
        %v690 = vunpack.c.h.b16 %v553
        %v691 = vunpack.c.l.b16 %v554
        %v692 = vunpack.c.h.b16 %v554
        %v693 = vunpack.c.l.b16 %v555
        %v694 = vunpack.c.h.b16 %v555
        %v695 = vunpack.c.l.b16 %v556
        %v696 = vunpack.c.h.b16 %v556
        %v697 = vunpack.c.l.b16 %v557
        %v698 = vunpack.c.h.b16 %v557
        %v699 = vunpack.c.l.b16 %v558
        %v700 = vunpack.c.h.b16 %v558
        %v701 = vunpack.c.l.b16 %v559
        %v702 = vunpack.c.h.b16 %v559
        %v703 = vunpack.c.l.b16 %v560
        %v704 = vunpack.c.h.b16 %v560
        %v705 = vunpack.c.l.b16 %v561
        %v706 = vunpack.c.h.b16 %v561
        %v707 = vunpack.c.l.b16 %v562
        %v708 = vunpack.c.h.b16 %v562
        %v709 = vunpack.c.l.b16 %v563
        %v710 = vunpack.c.h.b16 %v563
        %v711 = vunpack.c.l.b16 %v564
        %v712 = vunpack.c.h.b16 %v564
        %v713 = vunpack.c.l.b16 %v565
        %v714 = vunpack.c.h.b16 %v565
        %v715 = vunpack.c.l.b16 %v566
        %v716 = vunpack.c.h.b16 %v566
        %v717 = vunpack.c.l.b16 %v567
        %v718 = vunpack.c.h.b16 %v567
        %v719 = vunpack.c.l.b16 %v568
        %v720 = vunpack.c.h.b16 %v568
        %v721 = vunpack.c.l.b16 %v569
        %v722 = vunpack.c.h.b16 %v569
        %v723 = vunpack.c.l.b16 %v570
        %v724 = vunpack.c.h.b16 %v570
        %v725 = vunpack.c.l.b16 %v571
        %v726 = vunpack.c.h.b16 %v571
        %v727 = vunpack.c.l.b16 %v572
        %v728 = vunpack.c.h.b16 %v572
        %v729 = vunpack.c.l.b16 %v573
        %v730 = vunpack.c.h.b16 %v573
        %v731 = vunpack.c.l.b16 %v574
        %v732 = vunpack.c.h.b16 %v574
        %v733 = vunpack.c.l.b16 %v575
        %v734 = vunpack.c.h.b16 %v575
        %v735 = vunpack.c.l.b16 %v576
        %v736 = vunpack.c.h.b16 %v576
        %v737 = vpack.c.b16 %v677, %v673
        %v738 = vpack.c.b16 %v678, %v674
        %v739 = vpack.c.b16 %v679, %v675
        %v740 = vpack.c.b16 %v680, %v676
        %v741 = vpack.c.b16 %v685, %v681
        %v742 = vpack.c.b16 %v686, %v682
        %v743 = vpack.c.b16 %v687, %v683
        %v744 = vpack.c.b16 %v688, %v684
        %v745 = vpack.c.b16 %v693, %v689
        %v746 = vpack.c.b16 %v694, %v690
        %v747 = vpack.c.b16 %v695, %v691
        %v748 = vpack.c.b16 %v696, %v692
        %v749 = vpack.c.b16 %v701, %v697
        %v750 = vpack.c.b16 %v702, %v698
        %v751 = vpack.c.b16 %v703, %v699
        %v752 = vpack.c.b16 %v704, %v700
        %v753 = vpack.c.b16 %v709, %v705
        %v754 = vpack.c.b16 %v710, %v706
        %v755 = vpack.c.b16 %v711, %v707
        %v756 = vpack.c.b16 %v712, %v708
        %v757 = vpack.c.b16 %v717, %v713
        %v758 = vpack.c.b16 %v718, %v714
        %v759 = vpack.c.b16 %v719, %v715
        %v760 = vpack.c.b16 %v720, %v716
        %v761 = vpack.c.b16 %v725, %v721
        %v762 = vpack.c.b16 %v726, %v722
        %v763 = vpack.c.b16 %v727, %v723
        %v764 = vpack.c.b16 %v728, %v724
        %v765 = vpack.c.b16 %v733, %v729
        %v766 = vpack.c.b16 %v734, %v730
        %v767 = vpack.c.b16 %v735, %v731
        %v768 = vpack.c.b16 %v736, %v732
        %v865 = vunpack.c.l.b16 %v577
        %v866 = vunpack.c.h.b16 %v577
        %v867 = vunpack.c.l.b16 %v578
        %v868 = vunpack.c.h.b16 %v578
        %v869 = vunpack.c.l.b16 %v579
        %v870 = vunpack.c.h.b16 %v579
        %v871 = vunpack.c.l.b16 %v580
        %v872 = vunpack.c.h.b16 %v580
        %v873 = vunpack.c.l.b16 %v581
        %v874 = vunpack.c.h.b16 %v581
        %v875 = vunpack.c.l.b16 %v582
        %v876 = vunpack.c.h.b16 %v582
        %v877 = vunpack.c.l.b16 %v583
        %v878 = vunpack.c.h.b16 %v583
        %v879 = vunpack.c.l.b16 %v584
        %v880 = vunpack.c.h.b16 %v584
        %v881 = vunpack.c.l.b16 %v585
        %v882 = vunpack.c.h.b16 %v585
        %v883 = vunpack.c.l.b16 %v586
        %v884 = vunpack.c.h.b16 %v586
        %v885 = vunpack.c.l.b16 %v587
        %v886 = vunpack.c.h.b16 %v587
        %v887 = vunpack.c.l.b16 %v588
        %v888 = vunpack.c.h.b16 %v588
        %v889 = vunpack.c.l.b16 %v589
        %v890 = vunpack.c.h.b16 %v589
        %v891 = vunpack.c.l.b16 %v590
        %v892 = vunpack.c.h.b16 %v590
        %v893 = vunpack.c.l.b16 %v591
        %v894 = vunpack.c.h.b16 %v591
        %v895 = vunpack.c.l.b16 %v592
        %v896 = vunpack.c.h.b16 %v592
        %v897 = vunpack.c.l.b16 %v593
        %v898 = vunpack.c.h.b16 %v593
        %v899 = vunpack.c.l.b16 %v594
        %v900 = vunpack.c.h.b16 %v594
        %v901 = vunpack.c.l.b16 %v595
        %v902 = vunpack.c.h.b16 %v595
        %v903 = vunpack.c.l.b16 %v596
        %v904 = vunpack.c.h.b16 %v596
        %v905 = vunpack.c.l.b16 %v597
        %v906 = vunpack.c.h.b16 %v597
        %v907 = vunpack.c.l.b16 %v598
        %v908 = vunpack.c.h.b16 %v598
        %v909 = vunpack.c.l.b16 %v599
        %v910 = vunpack.c.h.b16 %v599
        %v911 = vunpack.c.l.b16 %v600
        %v912 = vunpack.c.h.b16 %v600
        %v913 = vunpack.c.l.b16 %v601
        %v914 = vunpack.c.h.b16 %v601
        %v915 = vunpack.c.l.b16 %v602
        %v916 = vunpack.c.h.b16 %v602
        %v917 = vunpack.c.l.b16 %v603
        %v918 = vunpack.c.h.b16 %v603
        %v919 = vunpack.c.l.b16 %v604
        %v920 = vunpack.c.h.b16 %v604
        %v921 = vunpack.c.l.b16 %v605
        %v922 = vunpack.c.h.b16 %v605
        %v923 = vunpack.c.l.b16 %v606
        %v924 = vunpack.c.h.b16 %v606
        %v925 = vunpack.c.l.b16 %v607
        %v926 = vunpack.c.h.b16 %v607
        %v927 = vunpack.c.l.b16 %v608
        %v928 = vunpack.c.h.b16 %v608
        %v929 = vunpack.c.l.b16 %v609
        %v930 = vunpack.c.h.b16 %v609
        %v931 = vunpack.c.l.b16 %v610
        %v932 = vunpack.c.h.b16 %v610
        %v933 = vunpack.c.l.b16 %v611
        %v934 = vunpack.c.h.b16 %v611
        %v935 = vunpack.c.l.b16 %v612
        %v936 = vunpack.c.h.b16 %v612
        %v937 = vunpack.c.l.b16 %v613
        %v938 = vunpack.c.h.b16 %v613
        %v939 = vunpack.c.l.b16 %v614
        %v940 = vunpack.c.h.b16 %v614
        %v941 = vunpack.c.l.b16 %v615
        %v942 = vunpack.c.h.b16 %v615
        %v943 = vunpack.c.l.b16 %v616
        %v944 = vunpack.c.h.b16 %v616
        %v945 = vunpack.c.l.b16 %v617
        %v946 = vunpack.c.h.b16 %v617
        %v947 = vunpack.c.l.b16 %v618
        %v948 = vunpack.c.h.b16 %v618
        %v949 = vunpack.c.l.b16 %v619
        %v950 = vunpack.c.h.b16 %v619
        %v951 = vunpack.c.l.b16 %v620
        %v952 = vunpack.c.h.b16 %v620
        %v953 = vunpack.c.l.b16 %v621
        %v954 = vunpack.c.h.b16 %v621
        %v955 = vunpack.c.l.b16 %v622
        %v956 = vunpack.c.h.b16 %v622
        %v957 = vunpack.c.l.b16 %v623
        %v958 = vunpack.c.h.b16 %v623
        %v959 = vunpack.c.l.b16 %v624
        %v960 = vunpack.c.h.b16 %v624
        %v961 = vunpack.c.l.b16 %v625
        %v962 = vunpack.c.h.b16 %v625
        %v963 = vunpack.c.l.b16 %v626
        %v964 = vunpack.c.h.b16 %v626
        %v965 = vunpack.c.l.b16 %v627
        %v966 = vunpack.c.h.b16 %v627
        %v967 = vunpack.c.l.b16 %v628
        %v968 = vunpack.c.h.b16 %v628
        %v969 = vunpack.c.l.b16 %v629
        %v970 = vunpack.c.h.b16 %v629
        %v971 = vunpack.c.l.b16 %v630
        %v972 = vunpack.c.h.b16 %v630
        %v973 = vunpack.c.l.b16 %v631
        %v974 = vunpack.c.h.b16 %v631
        %v975 = vunpack.c.l.b16 %v632
        %v976 = vunpack.c.h.b16 %v632
        %v977 = vunpack.c.l.b16 %v633
        %v978 = vunpack.c.h.b16 %v633
        %v979 = vunpack.c.l.b16 %v634
        %v980 = vunpack.c.h.b16 %v634
        %v981 = vunpack.c.l.b16 %v635
        %v982 = vunpack.c.h.b16 %v635
        %v983 = vunpack.c.l.b16 %v636
        %v984 = vunpack.c.h.b16 %v636
        %v985 = vunpack.c.l.b16 %v637
        %v986 = vunpack.c.h.b16 %v637
        %v987 = vunpack.c.l.b16 %v638
        %v988 = vunpack.c.h.b16 %v638
        %v989 = vunpack.c.l.b16 %v639
        %v990 = vunpack.c.h.b16 %v639
        %v991 = vunpack.c.l.b16 %v640
        %v992 = vunpack.c.h.b16 %v640
        %v993 = vpack.c.b16 %v867, %v865
        %v994 = vpack.c.b16 %v868, %v866
        %v995 = vpack.c.b16 %v871, %v869
        %v996 = vpack.c.b16 %v872, %v870
        %v997 = vpack.c.b16 %v875, %v873
        %v998 = vpack.c.b16 %v876, %v874
        %v999 = vpack.c.b16 %v879, %v877
        %v1000 = vpack.c.b16 %v880, %v878
        %v1001 = vpack.c.b16 %v883, %v881
        %v1002 = vpack.c.b16 %v884, %v882
        %v1003 = vpack.c.b16 %v887, %v885
        %v1004 = vpack.c.b16 %v888, %v886
        %v1005 = vpack.c.b16 %v891, %v889
        %v1006 = vpack.c.b16 %v892, %v890
        %v1007 = vpack.c.b16 %v895, %v893
        %v1008 = vpack.c.b16 %v896, %v894
        %v1009 = vpack.c.b16 %v899, %v897
        %v1010 = vpack.c.b16 %v900, %v898
        %v1011 = vpack.c.b16 %v903, %v901
        %v1012 = vpack.c.b16 %v904, %v902
        %v1013 = vpack.c.b16 %v907, %v905
        %v1014 = vpack.c.b16 %v908, %v906
        %v1015 = vpack.c.b16 %v911, %v909
        %v1016 = vpack.c.b16 %v912, %v910
        %v1017 = vpack.c.b16 %v915, %v913
        %v1018 = vpack.c.b16 %v916, %v914
        %v1019 = vpack.c.b16 %v919, %v917
        %v1020 = vpack.c.b16 %v920, %v918
        %v1021 = vpack.c.b16 %v923, %v921
        %v1022 = vpack.c.b16 %v924, %v922
        %v1023 = vpack.c.b16 %v927, %v925
        %v1024 = vpack.c.b16 %v928, %v926
        %v1025 = vpack.c.b16 %v931, %v929
        %v1026 = vpack.c.b16 %v932, %v930
        %v1027 = vpack.c.b16 %v935, %v933
        %v1028 = vpack.c.b16 %v936, %v934
        %v1029 = vpack.c.b16 %v939, %v937
        %v1030 = vpack.c.b16 %v940, %v938
        %v1031 = vpack.c.b16 %v943, %v941
        %v1032 = vpack.c.b16 %v944, %v942
        %v1033 = vpack.c.b16 %v947, %v945
        %v1034 = vpack.c.b16 %v948, %v946
        %v1035 = vpack.c.b16 %v951, %v949
        %v1036 = vpack.c.b16 %v952, %v950
        %v1037 = vpack.c.b16 %v955, %v953
        %v1038 = vpack.c.b16 %v956, %v954
        %v1039 = vpack.c.b16 %v959, %v957
        %v1040 = vpack.c.b16 %v960, %v958
        %v1041 = vpack.c.b16 %v963, %v961
        %v1042 = vpack.c.b16 %v964, %v962
        %v1043 = vpack.c.b16 %v967, %v965
        %v1044 = vpack.c.b16 %v968, %v966
        %v1045 = vpack.c.b16 %v971, %v969
        %v1046 = vpack.c.b16 %v972, %v970
        %v1047 = vpack.c.b16 %v975, %v973
        %v1048 = vpack.c.b16 %v976, %v974
        %v1049 = vpack.c.b16 %v979, %v977
        %v1050 = vpack.c.b16 %v980, %v978
        %v1051 = vpack.c.b16 %v983, %v981
        %v1052 = vpack.c.b16 %v984, %v982
        %v1053 = vpack.c.b16 %v987, %v985
        %v1054 = vpack.c.b16 %v988, %v986
        %v1055 = vpack.c.b16 %v991, %v989
        %v1056 = vpack.c.b16 %v992, %v990
        %1121 = vmatprep.subr.bf16.mxu0 %v1008
        %1122 = vmatpush1.bf16.msra.mxu0 %v1007
        %1123 = vmatprep.subr.bf16.mxu0 %v1006
        %1124 = vmatpush1.bf16.msra.mxu0 %v1005
        %1125 = vmatprep.subr.bf16.mxu0 %v1004
        %1126 = vmatpush1.bf16.msra.mxu0 %v1003
        %1127 = vmatprep.subr.bf16.mxu0 %v1002
        %1128 = vmatpush1.bf16.msra.mxu0 %v1001
        %1129 = vmatprep.subr.bf16.mxu0 %v1000
        %1130 = vmatpush1.bf16.msra.mxu0 %v999
        %1131 = vmatprep.subr.bf16.mxu0 %v998
        %1132 = vmatpush1.bf16.msra.mxu0 %v997
        %1133 = vmatprep.subr.bf16.mxu0 %v996
        %1134 = vmatpush1.bf16.msra.mxu0 %v995
        %1135 = vmatprep.subr.bf16.mxu0 %v994
        %1136 = vmatpush1.bf16.msra.mxu0 %v993
        %1137 = vmatprep.subr.bf16.mxu0 %v1024
        %1138 = vmatpush2.bf16.msra.mxu0 %v1023
        %1139 = vmatprep.subr.bf16.mxu0 %v1022
        %1140 = vmatpush2.bf16.msra.mxu0 %v1021
        %1141 = vmatprep.subr.bf16.mxu0 %v1020
        %1142 = vmatpush2.bf16.msra.mxu0 %v1019
        %1143 = vmatprep.subr.bf16.mxu0 %v1018
        %1144 = vmatpush2.bf16.msra.mxu0 %v1017
        %1145 = vmatprep.subr.bf16.mxu0 %v1016
        %1146 = vmatpush2.bf16.msra.mxu0 %v1015
        %1147 = vmatprep.subr.bf16.mxu0 %v1014
        %1148 = vmatpush2.bf16.msra.mxu0 %v1013
        %1149 = vmatprep.subr.bf16.mxu0 %v1012
        %1150 = vmatpush2.bf16.msra.mxu0 %v1011
        %1151 = vmatprep.subr.bf16.mxu0 %v1010
        %1152 = vmatpush2.bf16.msra.mxu0 %v1009
        %1153 = vmatprep.mubr.bf16.mxu0 %v738
        %1154 = vmatmul.mubr.bf16.gmra.mxu0 %v737
        %v1155 = vpop.f32.mrf.mxu0
        %v1156 = vadd.f32 0.0, %v1155
        %v1157 = vpop.f32.mrf.mxu0
        %v1158 = vadd.f32 0.0, %v1157
        %v1159 = vpop.f32.mrf.mxu0
        %v1160 = vadd.f32 0.0, %v1159
        %v1161 = vpop.f32.mrf.mxu0
        %v1162 = vadd.f32 0.0, %v1161
        %1163 = vmatprep.mubr.bf16.mxu0 %v742
        %1164 = vmatmul.mubr.bf16.gmra.mxu0 %v741
        %v1165 = vpop.f32.mrf.mxu0
        %v1166 = vadd.f32 0.0, %v1165
        %v1167 = vpop.f32.mrf.mxu0
        %v1168 = vadd.f32 0.0, %v1167
        %v1169 = vpop.f32.mrf.mxu0
        %v1170 = vadd.f32 0.0, %v1169
        %v1171 = vpop.f32.mrf.mxu0
        %v1172 = vadd.f32 0.0, %v1171
        %1173 = vmatprep.mubr.bf16.mxu0 %v746
        %1174 = vmatmul.mubr.bf16.gmra.mxu0 %v745
        %v1175 = vpop.f32.mrf.mxu0
        %v1176 = vadd.f32 0.0, %v1175
        %v1177 = vpop.f32.mrf.mxu0
        %v1178 = vadd.f32 0.0, %v1177
        %v1179 = vpop.f32.mrf.mxu0
        %v1180 = vadd.f32 0.0, %v1179
        %v1181 = vpop.f32.mrf.mxu0
        %v1182 = vadd.f32 0.0, %v1181
        %1183 = vmatprep.mubr.bf16.mxu0 %v750
        %1184 = vmatmul.mubr.bf16.gmra.mxu0 %v749
        %v1185 = vpop.f32.mrf.mxu0
        %v1186 = vadd.f32 0.0, %v1185
        %v1187 = vpop.f32.mrf.mxu0
        %v1188 = vadd.f32 0.0, %v1187
        %v1189 = vpop.f32.mrf.mxu0
        %v1190 = vadd.f32 0.0, %v1189
        %v1191 = vpop.f32.mrf.mxu0
        %v1192 = vadd.f32 0.0, %v1191
        %1193 = vmatprep.mubr.bf16.mxu0 %v754
        %1194 = vmatmul.mubr.bf16.gmra.mxu0 %v753
        %v1195 = vpop.f32.mrf.mxu0
        %v1196 = vadd.f32 0.0, %v1195
        %v1197 = vpop.f32.mrf.mxu0
        %v1198 = vadd.f32 0.0, %v1197
        %v1199 = vpop.f32.mrf.mxu0
        %v1200 = vadd.f32 0.0, %v1199
        %v1201 = vpop.f32.mrf.mxu0
        %v1202 = vadd.f32 0.0, %v1201
        %1203 = vmatprep.mubr.bf16.mxu0 %v758
        %1204 = vmatmul.mubr.bf16.gmra.mxu0 %v757
        %v1205 = vpop.f32.mrf.mxu0
        %v1206 = vadd.f32 0.0, %v1205
        %v1207 = vpop.f32.mrf.mxu0
        %v1208 = vadd.f32 0.0, %v1207
        %v1209 = vpop.f32.mrf.mxu0
        %v1210 = vadd.f32 0.0, %v1209
        %v1211 = vpop.f32.mrf.mxu0
        %v1212 = vadd.f32 0.0, %v1211
        %1213 = vmatprep.mubr.bf16.mxu0 %v762
        %1214 = vmatmul.mubr.bf16.gmra.mxu0 %v761
        %v1215 = vpop.f32.mrf.mxu0
        %v1216 = vadd.f32 0.0, %v1215
        %v1217 = vpop.f32.mrf.mxu0
        %v1218 = vadd.f32 0.0, %v1217
        %v1219 = vpop.f32.mrf.mxu0
        %v1220 = vadd.f32 0.0, %v1219
        %v1221 = vpop.f32.mrf.mxu0
        %v1222 = vadd.f32 0.0, %v1221
        %1223 = vmatprep.mubr.bf16.mxu0 %v766
        %1224 = vmatmul.mubr.bf16.gmra.mxu0 %v765
        %v1225 = vpop.f32.mrf.mxu0
        %v1226 = vadd.f32 0.0, %v1225
        %v1227 = vpop.f32.mrf.mxu0
        %v1228 = vadd.f32 0.0, %v1227
        %v1229 = vpop.f32.mrf.mxu0
        %v1230 = vadd.f32 0.0, %v1229
        %v1231 = vpop.f32.mrf.mxu0
        %v1232 = vadd.f32 0.0, %v1231
        %1233 = vdwg.mxu0
        %1234 = vmatprep.subr.bf16.mxu0 %v1040
        %1235 = vmatpush1.bf16.msra.mxu0 %v1039
        %1236 = vmatprep.subr.bf16.mxu0 %v1038
        %1237 = vmatpush1.bf16.msra.mxu0 %v1037
        %1238 = vmatprep.subr.bf16.mxu0 %v1036
        %1239 = vmatpush1.bf16.msra.mxu0 %v1035
        %1240 = vmatprep.subr.bf16.mxu0 %v1034
        %1241 = vmatpush1.bf16.msra.mxu0 %v1033
        %1242 = vmatprep.subr.bf16.mxu0 %v1032
        %1243 = vmatpush1.bf16.msra.mxu0 %v1031
        %1244 = vmatprep.subr.bf16.mxu0 %v1030
        %1245 = vmatpush1.bf16.msra.mxu0 %v1029
        %1246 = vmatprep.subr.bf16.mxu0 %v1028
        %1247 = vmatpush1.bf16.msra.mxu0 %v1027
        %1248 = vmatprep.subr.bf16.mxu0 %v1026
        %1249 = vmatpush1.bf16.msra.mxu0 %v1025
        %1250 = vmatprep.subr.bf16.mxu0 %v1056
        %1251 = vmatpush2.bf16.msra.mxu0 %v1055
        %1252 = vmatprep.subr.bf16.mxu0 %v1054
        %1253 = vmatpush2.bf16.msra.mxu0 %v1053
        %1254 = vmatprep.subr.bf16.mxu0 %v1052
        %1255 = vmatpush2.bf16.msra.mxu0 %v1051
        %1256 = vmatprep.subr.bf16.mxu0 %v1050
        %1257 = vmatpush2.bf16.msra.mxu0 %v1049
        %1258 = vmatprep.subr.bf16.mxu0 %v1048
        %1259 = vmatpush2.bf16.msra.mxu0 %v1047
        %1260 = vmatprep.subr.bf16.mxu0 %v1046
        %1261 = vmatpush2.bf16.msra.mxu0 %v1045
        %1262 = vmatprep.subr.bf16.mxu0 %v1044
        %1263 = vmatpush2.bf16.msra.mxu0 %v1043
        %1264 = vmatprep.subr.bf16.mxu0 %v1042
        %1265 = vmatpush2.bf16.msra.mxu0 %v1041
        %1266 = vmatprep.mubr.bf16.mxu0 %v740
        %1267 = vmatmul.mubr.bf16.gmra.mxu0 %v739
        %v1268 = vpop.f32.mrf.mxu0
        %v1269 = vadd.f32 %v1156, %v1268
        %v1270 = vpop.f32.mrf.mxu0
        %v1271 = vadd.f32 %v1158, %v1270
        %v1272 = vpop.f32.mrf.mxu0
        %v1273 = vadd.f32 %v1160, %v1272
        %v1274 = vpop.f32.mrf.mxu0
        %v1275 = vadd.f32 %v1162, %v1274
        %1276 = vmatprep.mubr.bf16.mxu0 %v744
        %1277 = vmatmul.mubr.bf16.gmra.mxu0 %v743
        %v1278 = vpop.f32.mrf.mxu0
        %v1279 = vadd.f32 %v1166, %v1278
        %v1280 = vpop.f32.mrf.mxu0
        %v1281 = vadd.f32 %v1168, %v1280
        %v1282 = vpop.f32.mrf.mxu0
        %v1283 = vadd.f32 %v1170, %v1282
        %v1284 = vpop.f32.mrf.mxu0
        %v1285 = vadd.f32 %v1172, %v1284
        %1286 = vmatprep.mubr.bf16.mxu0 %v748
        %1287 = vmatmul.mubr.bf16.gmra.mxu0 %v747
        %v1288 = vpop.f32.mrf.mxu0
        %v1289 = vadd.f32 %v1176, %v1288
        %v1290 = vpop.f32.mrf.mxu0
        %v1291 = vadd.f32 %v1178, %v1290
        %v1292 = vpop.f32.mrf.mxu0
        %v1293 = vadd.f32 %v1180, %v1292
        %v1294 = vpop.f32.mrf.mxu0
        %v1295 = vadd.f32 %v1182, %v1294
        %1296 = vmatprep.mubr.bf16.mxu0 %v752
        %1297 = vmatmul.mubr.bf16.gmra.mxu0 %v751
        %v1298 = vpop.f32.mrf.mxu0
        %v1299 = vadd.f32 %v1186, %v1298
        %v1300 = vpop.f32.mrf.mxu0
        %v1301 = vadd.f32 %v1188, %v1300
        %v1302 = vpop.f32.mrf.mxu0
        %v1303 = vadd.f32 %v1190, %v1302
        %v1304 = vpop.f32.mrf.mxu0
        %v1305 = vadd.f32 %v1192, %v1304
        %1306 = vmatprep.mubr.bf16.mxu0 %v756
        %1307 = vmatmul.mubr.bf16.gmra.mxu0 %v755
        %v1308 = vpop.f32.mrf.mxu0
        %v1309 = vadd.f32 %v1196, %v1308
        %v1310 = vpop.f32.mrf.mxu0
        %v1311 = vadd.f32 %v1198, %v1310
        %v1312 = vpop.f32.mrf.mxu0
        %v1313 = vadd.f32 %v1200, %v1312
        %v1314 = vpop.f32.mrf.mxu0
        %v1315 = vadd.f32 %v1202, %v1314
        %1316 = vmatprep.mubr.bf16.mxu0 %v760
        %1317 = vmatmul.mubr.bf16.gmra.mxu0 %v759
        %v1318 = vpop.f32.mrf.mxu0
        %v1319 = vadd.f32 %v1206, %v1318
        %v1320 = vpop.f32.mrf.mxu0
        %v1321 = vadd.f32 %v1208, %v1320
        %v1322 = vpop.f32.mrf.mxu0
        %v1323 = vadd.f32 %v1210, %v1322
        %v1324 = vpop.f32.mrf.mxu0
        %v1325 = vadd.f32 %v1212, %v1324
        %1326 = vmatprep.mubr.bf16.mxu0 %v764
        %1327 = vmatmul.mubr.bf16.gmra.mxu0 %v763
        %v1328 = vpop.f32.mrf.mxu0
        %v1329 = vadd.f32 %v1216, %v1328
        %v1330 = vpop.f32.mrf.mxu0
        %v1331 = vadd.f32 %v1218, %v1330
        %v1332 = vpop.f32.mrf.mxu0
        %v1333 = vadd.f32 %v1220, %v1332
        %v1334 = vpop.f32.mrf.mxu0
        %v1335 = vadd.f32 %v1222, %v1334
        %1336 = vmatprep.mubr.bf16.mxu0 %v768
        %1337 = vmatmul.mubr.bf16.gmra.mxu0 %v767
        %v1338 = vpop.f32.mrf.mxu0
        %v1339 = vadd.f32 %v1226, %v1338
        %v1340 = vpop.f32.mrf.mxu0
        %v1341 = vadd.f32 %v1228, %v1340
        %v1342 = vpop.f32.mrf.mxu0
        %v1343 = vadd.f32 %v1230, %v1342
        %v1344 = vpop.f32.mrf.mxu0
        %v1345 = vadd.f32 %v1232, %v1344
        %1346 = vdwg.mxu0
        %s1347 = smul.u32 %s23, 256
        %p1348 = scmp.eq.s32.totalorder %s22, 23
        %p1349 = scmp.ne.s32.totalorder %s22, 23
        // Predicated region
        $region45: #{tpu_custom_call.1} parent=27 // pred_check
          %p1350 = pneg %p1349
        $region46: #{tpu_custom_call.1} parent=27 // pred_check_branch
          %1352 = sbr.rel (%p1350) target = $region48
        $region47: #{tpu_custom_call.1} parent=27 // pred_region
          %v1353 = vpack.c.bf16 %v1273, %v1269
          %v1354 = vpack.c.bf16 %v1275, %v1271
          %v1355 = vpack.c.bf16 %v1283, %v1279
          %v1356 = vpack.c.bf16 %v1285, %v1281
          %v1357 = vpack.c.bf16 %v1293, %v1289
          %v1358 = vpack.c.bf16 %v1295, %v1291
          %v1359 = vpack.c.bf16 %v1303, %v1299
          %v1360 = vpack.c.bf16 %v1305, %v1301
          %v1361 = vpack.c.bf16 %v1313, %v1309
          %v1362 = vpack.c.bf16 %v1315, %v1311
          %v1363 = vpack.c.bf16 %v1323, %v1319
          %v1364 = vpack.c.bf16 %v1325, %v1321
          %v1365 = vpack.c.bf16 %v1333, %v1329
          %v1366 = vpack.c.bf16 %v1335, %v1331
          %v1367 = vpack.c.bf16 %v1343, %v1339
          %v1368 = vpack.c.bf16 %v1345, %v1341
          %v1385 = vunpack.c.l.b16 %v1353
          %v1386 = vunpack.c.l.b16 %v1354
          %v1387 = vunpack.c.h.b16 %v1353
          %v1388 = vunpack.c.h.b16 %v1354
          %v1389 = vunpack.c.l.b16 %v1355
          %v1390 = vunpack.c.l.b16 %v1356
          %v1391 = vunpack.c.h.b16 %v1355
          %v1392 = vunpack.c.h.b16 %v1356
          %v1393 = vunpack.c.l.b16 %v1357
          %v1394 = vunpack.c.l.b16 %v1358
          %v1395 = vunpack.c.h.b16 %v1357
          %v1396 = vunpack.c.h.b16 %v1358
          %v1397 = vunpack.c.l.b16 %v1359
          %v1398 = vunpack.c.l.b16 %v1360
          %v1399 = vunpack.c.h.b16 %v1359
          %v1400 = vunpack.c.h.b16 %v1360
          %v1401 = vunpack.c.l.b16 %v1361
          %v1402 = vunpack.c.l.b16 %v1362
          %v1403 = vunpack.c.h.b16 %v1361
          %v1404 = vunpack.c.h.b16 %v1362
          %v1405 = vunpack.c.l.b16 %v1363
          %v1406 = vunpack.c.l.b16 %v1364
          %v1407 = vunpack.c.h.b16 %v1363
          %v1408 = vunpack.c.h.b16 %v1364
          %v1409 = vunpack.c.l.b16 %v1365
          %v1410 = vunpack.c.l.b16 %v1366
          %v1411 = vunpack.c.h.b16 %v1365
          %v1412 = vunpack.c.h.b16 %v1366
          %v1413 = vunpack.c.l.b16 %v1367
          %v1414 = vunpack.c.l.b16 %v1368
          %v1415 = vunpack.c.h.b16 %v1367
          %v1416 = vunpack.c.h.b16 %v1368
          %v1417 = vpack.c.b16 %v1386, %v1385
          %v1418 = vpack.c.b16 %v1388, %v1387
          %v1419 = vpack.c.b16 %v1390, %v1389
          %v1420 = vpack.c.b16 %v1392, %v1391
          %v1421 = vpack.c.b16 %v1394, %v1393
          %v1422 = vpack.c.b16 %v1396, %v1395
          %v1423 = vpack.c.b16 %v1398, %v1397
          %v1424 = vpack.c.b16 %v1400, %v1399
          %v1425 = vpack.c.b16 %v1402, %v1401
          %v1426 = vpack.c.b16 %v1404, %v1403
          %v1427 = vpack.c.b16 %v1406, %v1405
          %v1428 = vpack.c.b16 %v1408, %v1407
          %v1429 = vpack.c.b16 %v1410, %v1409
          %v1430 = vpack.c.b16 %v1412, %v1411
          %v1431 = vpack.c.b16 %v1414, %v1413
          %v1432 = vpack.c.b16 %v1416, %v1415
          %s1449 = sshra.s32 %s1347, 7
          %s1450 = sand.u32 %s1347, 127
          %s1451 = smul.addr %s1449, 4
          %s1452 = scalar_lea.vmem [#allocation3], %s1451
          %1453 = vst [vmem:[%s1452] sm:$0xff] %v1417
          %1454 = vst [vmem:[%s1452 + $0x10] sm:$0xff] %v1418
          %1455 = vst [vmem:[%s1452 + $0x20] sm:$0xff] %v1419
          %1456 = vst [vmem:[%s1452 + $0x30] sm:$0xff] %v1420
          %1457 = vst [vmem:[%s1452 + $0x40] sm:$0xff] %v1421
          %1458 = vst [vmem:[%s1452 + $0x50] sm:$0xff] %v1422
          %1459 = vst [vmem:[%s1452 + $0x60] sm:$0xff] %v1423
          %1460 = vst [vmem:[%s1452 + $0x70] sm:$0xff] %v1424
          %1461 = vst [vmem:[%s1452 + $0x80] sm:$0xff] %v1425
          %1462 = vst [vmem:[%s1452 + $0x90] sm:$0xff] %v1426
          %1463 = vst [vmem:[%s1452 + $0xa0] sm:$0xff] %v1427
          %1464 = vst [vmem:[%s1452 + $0xb0] sm:$0xff] %v1428
          %1465 = vst [vmem:[%s1452 + $0xc0] sm:$0xff] %v1429
          %1466 = vst [vmem:[%s1452 + $0xd0] sm:$0xff] %v1430
          %1467 = vst [vmem:[%s1452 + $0xe0] sm:$0xff] %v1431
          %1468 = vst [vmem:[%s1452 + $0xf0] sm:$0xff] %v1432
        $region48: #{tpu_custom_call.1} parent=27 // pred_fallthru
          _
        // Predicated region
        $region49: #{tpu_custom_call.1} parent=27 // pred_check
          %p1469 = pneg %p1348
        $region50: #{tpu_custom_call.1} parent=27 // pred_check_branch
          %1471 = sbr.rel (%p1469) target = $region52
        $region51: #{tpu_custom_call.1} parent=27 // pred_region
          %s1472 = sshra.s32 %s1347, 7
          %s1473 = sand.u32 %s1347, 127
          %s1474 = smul.addr %s1472, 8
          %s1475 = scalar_lea.vmem [#allocation9], %s1474
          %1476 = vst [vmem:[%s1475] sm:$0xff] %v1269
          %1477 = vst [vmem:[%s1475 + $0x8] sm:$0xff] %v1271
          %1478 = vst [vmem:[%s1475 + $0x20] sm:$0xff] %v1273
          %1479 = vst [vmem:[%s1475 + $0x28] sm:$0xff] %v1275
          %1480 = vst [vmem:[%s1475 + $0x40] sm:$0xff] %v1279
          %1481 = vst [vmem:[%s1475 + $0x48] sm:$0xff] %v1281
          %1482 = vst [vmem:[%s1475 + $0x60] sm:$0xff] %v1283
          %1483 = vst [vmem:[%s1475 + $0x68] sm:$0xff] %v1285
          %1484 = vst [vmem:[%s1475 + $0x80] sm:$0xff] %v1289
          %1485 = vst [vmem:[%s1475 + $0x88] sm:$0xff] %v1291
          %1486 = vst [vmem:[%s1475 + $0xa0] sm:$0xff] %v1293
          %1487 = vst [vmem:[%s1475 + $0xa8] sm:$0xff] %v1295
          %1488 = vst [vmem:[%s1475 + $0xc0] sm:$0xff] %v1299
          %1489 = vst [vmem:[%s1475 + $0xc8] sm:$0xff] %v1301
          %1490 = vst [vmem:[%s1475 + $0xe0] sm:$0xff] %v1303
          %1491 = vst [vmem:[%s1475 + $0xe8] sm:$0xff] %v1305
          %1492 = vst [vmem:[%s1475 + $0x100] sm:$0xff] %v1309
          %1493 = vst [vmem:[%s1475 + $0x108] sm:$0xff] %v1311
          %1494 = vst [vmem:[%s1475 + $0x120] sm:$0xff] %v1313
          %1495 = vst [vmem:[%s1475 + $0x128] sm:$0xff] %v1315
          %1496 = vst [vmem:[%s1475 + $0x140] sm:$0xff] %v1319
          %1497 = vst [vmem:[%s1475 + $0x148] sm:$0xff] %v1321
          %1498 = vst [vmem:[%s1475 + $0x160] sm:$0xff] %v1323
          %1499 = vst [vmem:[%s1475 + $0x168] sm:$0xff] %v1325
          %1500 = vst [vmem:[%s1475 + $0x180] sm:$0xff] %v1329
          %1501 = vst [vmem:[%s1475 + $0x188] sm:$0xff] %v1331
          %1502 = vst [vmem:[%s1475 + $0x1a0] sm:$0xff] %v1333
          %1503 = vst [vmem:[%s1475 + $0x1a8] sm:$0xff] %v1335
          %1504 = vst [vmem:[%s1475 + $0x1c0] sm:$0xff] %v1339
          %1505 = vst [vmem:[%s1475 + $0x1c8] sm:$0xff] %v1341
          %1506 = vst [vmem:[%s1475 + $0x1e0] sm:$0xff] %v1343
          %1507 = vst [vmem:[%s1475 + $0x1e8] sm:$0xff] %v1345
        $region52: #{tpu_custom_call.1} parent=27 // pred_fallthru
          _
        // Predicated region
        $region53: #{tpu_custom_call.1} parent=27 // pred_check
          %p1508 = pneg %p92
        $region54: #{tpu_custom_call.1} parent=27 // pred_check_branch
          %1510 = sbr.rel (%p1508) target = $region56
        $region55: #{tpu_custom_call.1} parent=27 // pred_region
          %s1512 = ssub.s32 8192, 8192
          %1513 = vsyncadd [#allocation6], %s1512
          %s1514 = sshll.u32 [#allocation9], 4
          %s1515 = int_to_ptr.vmem [resolvable:$true] %s1514
          %1520 = dma.vmem_to_hbm [thread:$0]  %s1515, 8192, %s2, [#allocation6], 512, 512, 32
        $region56: #{tpu_custom_call.1} parent=27 // pred_fallthru
          _
        // Predicated region
        $region57: #{tpu_custom_call.1} parent=27 // pred_check
          %p1521 = pneg %p92
        $region58: #{tpu_custom_call.1} parent=27 // pred_check_branch
          %1523 = sbr.rel (%p1521) target = $region60
        $region59: #{tpu_custom_call.1} parent=27 // pred_region
          %1524 = dma.done [#allocation6], 8192
        $region60: #{tpu_custom_call.1} parent=27 // pred_fallthru
          _
      $region28: #{tpu_custom_call.1} parent=5 // pred_fallthru
        _
      %p1525 = scmp.le.s32.totalorder 2, %s13
      // Predicated region
      $region61: #{tpu_custom_call.1} parent=5 // pred_check
        %p1526 = pneg %p1525
      $region62: #{tpu_custom_call.1} parent=5 // pred_check_branch
        %1528 = sbr.rel (%p1526) target = $region64
      $region63: #{tpu_custom_call.1} parent=5 // pred_region
        %s1529 = ssub.s32 %s13, 2
      $region64: #{tpu_custom_call.1} parent=5 // pred_fallthru
        _
    $region6: #{tpu_custom_call.1} parent=1 // loop_footer
      %s17 = sadd.s32 1, %s13
    $region7: #{tpu_custom_call.1} parent=1 // loop_footer_branch
      %12 = sbr.rel target = $region3
    $region8: #{tpu_custom_call.1} parent=1 // loop_exit
      _
    %1530 = vsyncpa [#allocation5], 1
    %s1531 = scalar_lea.sflag [#allocation5], 1
    %1532 = vsyncpa %s1531, 1
    %1533 = vsyncpa [#allocation8], 1
    %s1534 = scalar_lea.sflag [#allocation8], 1
    %1535 = vsyncpa %s1534, 1
    %1536 = vsyncpa [#allocation6], 1
    %s1537 = scalar_lea.sflag [#allocation6], 1
    %1538 = vsyncpa %s1537, 1

</llo_original>
